<compile_context>
chip_gen: v7x
topology: tpu7x:2x2x1
jax: 0.10.0
libtpu: 0.0.40
codegen_flags: <defaults>
</compile_context>

<pallas_src>
import functools

import jax
import jax.numpy as jnp
import numpy as np
from jax.experimental import pallas as pl
from jax.experimental.pallas import tpu as pltpu


def _rup(x, m):
    return ((x + m - 1) // m) * m


# ----------------------------------------------------------------------------
# Pallas kernel: one decoder timestep per grid step, state carried in VMEM.
# ----------------------------------------------------------------------------
def _x_attn_kernel(hid_ref, ax0_ref, enc_ref, h0_ref, wpack_ref, wrows_ref,
                   out_ref, ax_scr, e_enc_scr, e_h0_scr,
                   *, A, o27, o69, o10, o15):
    f32 = jnp.float32
    bb, N, H = enc_ref.shape
    M = h0_ref.shape[1]
    P = out_ref.shape[-1]
    t = pl.program_id(1)

    # ---- packed (1, ·) row weights ------------------------------------------
    w3 = wrows_ref[0:1, 0:A]      # Linear3 column
    w4a = wrows_ref[1:2, 0:A]     # W4 cols for wx   (enc @ W1^T)
    w4b = wrows_ref[2:3, 0:A]     # W4 cols for wxy  (hid @ W2^T)
    w4c = wrows_ref[3:4, 0:A]     # W4 cols for wxr  (ax  * W3)
    w8a = wrows_ref[4:5, 0:A]     # W8 cols for wt   (h0  @ W5^T)
    w8b = wrows_ref[5:6, 0:A]     # W8 cols for wtx  (cxi @ W6^T)
    w8c = wrows_ref[6:7, 0:A]     # W8 cols for wty  (hid @ W7^T)
    w11a = wrows_ref[7:8, :]      # W11 cols for cxi
    w11b = wrows_ref[8:9, :]      # W11 cols for cti

    enc = enc_ref[...]            # (bb, N, H) — resident across timesteps
    h0 = h0_ref[...]              # (bb, M, H) — resident across timesteps

    # ---- prologue (t == 0): timestep-invariant projections, one flat dot ----
    @pl.when(t == 0)
    def _():
        w15t = wpack_ref[:, o15:o15 + 2 * A]            # [W1^T | W5^T]  (H, 2A)
        stacked = jnp.concatenate(
            [enc.reshape(bb * N, H), h0.reshape(bb * M, H)], axis=0)
        proj = jnp.tanh(jnp.dot(stacked, w15t, preferred_element_type=f32))
        t_wx = proj[:bb * N, 0:A].reshape(bb, N, A)      # tanh(enc @ W1^T)
        t_wt = proj[bb * N:, A:2 * A].reshape(bb, M, A)  # tanh(h0  @ W5^T)
        e_enc_scr[...] = jnp.sum(t_wx * w4a[None], axis=-1)   # (bb, N)
        e_h0_scr[...] = jnp.sum(t_wt * w8a[None], axis=-1)    # (bb, M)
        ax_scr[...] = ax0_ref[...]

    hid = hid_ref[0]              # (bb, H) — this timestep's decoder hidden
    ax = ax_scr[...]              # (bb, N) — carried attention state

    # ---- per-step hidden projections: one MXU dot for W2 and W7 -------------
    w27t = wpack_ref[:, o27:o27 + 2 * A]                 # [W2^T | W7^T]
    hp = jnp.tanh(jnp.dot(hid, w27t, preferred_element_type=f32))   # (bb, 2A)
    h1 = jnp.sum(hp[:, :A] * w4b, axis=-1, keepdims=True)           # (bb, 1)
    h3 = jnp.sum(hp[:, A:] * w8c, axis=-1, keepdims=True)           # (bb, 1)

    # ---- stage 1: attention over encoder hiddens ----------------------------
    t_wxr = jnp.tanh(ax[:, :, None] * w3[None])          # (bb, N, A)  VPU/EUP
    e1 = e_enc_scr[...] + jnp.sum(t_wxr * w4c[None], axis=-1) + h1   # (bb, N)
    e1 = e1 - jnp.max(e1, axis=-1, keepdims=True)
    p1 = jnp.exp(e1)
    axi = p1 * pl.reciprocal(jnp.sum(p1, axis=-1, keepdims=True), approx=True)
    ax_new = ax + axi
    ax_scr[...] = ax_new
    cxi = jnp.sum(axi[:, :, None] * enc, axis=1)         # (bb, H)

    # ---- stage 2: attention over h0 states -----------------------------------
    w69t = wpack_ref[:, o69:o69 + A + H]                 # [W6^T | W9^T]
    cp = jnp.tanh(jnp.dot(cxi, w69t, preferred_element_type=f32))   # (bb, A+H)
    h2 = jnp.sum(cp[:, :A] * w8b, axis=-1, keepdims=True)
    gxi = cp[:, A:]                                      # tanh(cxi @ W9^T)
    e2 = e_h0_scr[...] + h2 + h3
    e2 = e2 - jnp.max(e2, axis=-1, keepdims=True)
    p2 = jnp.exp(e2)
    ati = p2 * pl.reciprocal(jnp.sum(p2, axis=-1, keepdims=True), approx=True)
    cti = jnp.sum(ati[:, :, None] * h0, axis=1)          # (bb, H)

    # ---- gated combination ----------------------------------------------------
    w10t = wpack_ref[:, o10:o10 + H]
    gti = jnp.tanh(jnp.dot(cti, w10t, preferred_element_type=f32))
    zi = jax.nn.sigmoid(jnp.sum(cxi * w11a, axis=-1, keepdims=True)
                        + jnp.sum(cti * w11b, axis=-1, keepdims=True))
    ci = zi * gxi + (1.0 - zi) * gti                     # (bb, H)

    # ---- single lane-dense output slab: [ ci | ax_new | zero-pad ] -----------
    pad = P - (H + N)
    parts = [ci, ax_new]
    if pad > 0:
        parts.append(jnp.zeros((bb, pad), f32))
    out_ref[0] = jnp.concatenate(parts, axis=-1)


# ----------------------------------------------------------------------------
# One-time parameter packing (host side, hoisted out of the per-call path).
# ----------------------------------------------------------------------------
def pack_x_attn_params(params):
    W1, W2, W3, W4, W5, W6, W7, W8, W9, W10, W11 = [
        np.asarray(w, np.float32) for w in params]
    A, H = W1.shape
    assert W4.shape == (1, 3 * A) and W8.shape == (1, 3 * A)
    assert W11.shape == (1, 2 * H)

    # every matmul-weight group starts on a 128-lane boundary
    o27 = 0
    o69 = _rup(o27 + 2 * A, 128)
    o10 = _rup(o69 + A + H, 128)
    o15 = _rup(o10 + H, 128)
    wtot = _rup(o15 + 2 * A, 128)

    wpack = np.zeros((H, wtot), np.float32)
    wpack[:, o27:o27 + A] = W2.T
    wpack[:, o27 + A:o27 + 2 * A] = W7.T
    wpack[:, o69:o69 + A] = W6.T
    wpack[:, o69 + A:o69 + A + H] = W9.T
    wpack[:, o10:o10 + H] = W10.T
    wpack[:, o15:o15 + A] = W1.T
    wpack[:, o15 + A:o15 + 2 * A] = W5.T

    wrows = np.zeros((9, H), np.float32)
    wrows[0, :A] = W3[:, 0]
    wrows[1, :A] = W4[0, :A]
    wrows[2, :A] = W4[0, A:2 * A]
    wrows[3, :A] = W4[0, 2 * A:]
    wrows[4, :A] = W8[0, :A]
    wrows[5, :A] = W8[0, A:2 * A]
    wrows[6, :A] = W8[0, 2 * A:]
    wrows[7, :] = W11[0, :H]
    wrows[8, :] = W11[0, H:]

    meta = dict(A=A, H=H, o27=o27, o69=o69, o10=o10, o15=o15)
    return jnp.asarray(wpack), jnp.asarray(wrows), meta


def prepare_states(encoder_hiddens, h0_s):
    """(N,B,H)/(M,B,H) -> (B,N,H)/(B,M,H); run once per sequence."""
    enc = jnp.transpose(encoder_hiddens, (1, 0, 2)).astype(jnp.float32)
    h0 = jnp.transpose(h0_s, (1, 0, 2)).astype(jnp.float32)
    return enc, h0


# ----------------------------------------------------------------------------
# Fused multi-timestep forward (T=1 reproduces the module's forward exactly).
# ----------------------------------------------------------------------------
def x_attn_forward_fused(wpack, wrows, meta, hidden_seq, enc, h0, ax0,
                         *, batch_block=None):
    A, H = meta["A"], meta["H"]
    T, B, _ = hidden_seq.shape
    N = enc.shape[1]
    M = h0.shape[1]
    bb = B if batch_block is None else batch_block
    assert B % bb == 0 and (bb == B or bb % 8 == 0), \
        "batch_block must divide B and be a multiple of 8 (or the full batch)"
    nb = B // bb
    P = _rup(H + N, 128)

    kernel = functools.partial(
        _x_attn_kernel, A=A, o27=meta["o27"], o69=meta["o69"],
        o10=meta["o10"], o15=meta["o15"])

    grid_spec = pltpu.PrefetchScalarGridSpec(
        num_scalar_prefetch=0,
        grid=(nb, T),
        in_specs=[
            pl.BlockSpec((1, bb, H), lambda i, t: (t, i, 0)),   # hidden_seq
            pl.BlockSpec((bb, N), lambda i, t: (i, 0)),         # ax0 (resident)
            pl.BlockSpec((bb, N, H), lambda i, t: (i, 0, 0)),   # enc (resident)
            pl.BlockSpec((bb, M, H), lambda i, t: (i, 0, 0)),   # h0  (resident)
            pl.BlockSpec(wpack.shape, lambda i, t: (0, 0)),     # wpack (resident)
            pl.BlockSpec(wrows.shape, lambda i, t: (0, 0)),     # wrows (resident)
        ],
        out_specs=pl.BlockSpec((1, bb, P), lambda i, t: (t, i, 0)),
        scratch_shapes=[
            pltpu.VMEM((bb, N), jnp.float32),   # carried ax
            pltpu.VMEM((bb, N), jnp.float32),   # cached tanh(enc@W1^T)·w4a
            pltpu.VMEM((bb, M), jnp.float32),   # cached tanh(h0@W5^T)·w8a
        ],
    )

    out = pl.pallas_call(
        kernel,
        out_shape=jax.ShapeDtypeStruct((T, B, P), jnp.float32),
        grid_spec=grid_spec,
        compiler_params=pltpu.CompilerParams(
            dimension_semantics=("parallel", "arbitrary")),
    )(hidden_seq.astype(jnp.float32), ax0.astype(jnp.float32),
      enc, h0, wpack, wrows)

    ci_seq = out[:, :, :H]          # (T, B, H)
    ax_seq = out[:, :, H:H + N]     # (T, B, N)
    return ci_seq, ax_seq


# ----------------------------------------------------------------------------
# Module-signature-compatible single-step wrapper (slow path: packs per call).
# ----------------------------------------------------------------------------
def x_attn_forward(params, hidden, encoder_hiddens, h0_s, ax):
    wpack, wrows, meta = pack_x_attn_params(params)
    enc, h0 = prepare_states(encoder_hiddens, h0_s)
    ci_seq, ax_seq = x_attn_forward_fused(
        wpack, wrows, meta, hidden.astype(jnp.float32), enc, h0,
        ax[:, :, 0].astype(jnp.float32))
    return ci_seq[0], ax_seq[0][:, :, None]


# ----------------------------------------------------------------------------
# Deterministic parameter init (PyTorch nn.Linear shapes, no bias)
# ----------------------------------------------------------------------------
def init_params(key, hidden_size):
    H = hidden_size
    A = H // 2
    shapes = [(A, H), (A, H), (A, 1), (1, 3 * A),
              (A, H), (A, H), (A, H), (1, 3 * A),
              (H, H), (H, H), (1, 2 * H)]
    params = []
    for s in shapes:
        key, k = jax.random.split(key)
        bound = 1.0 / np.sqrt(s[1])
        params.append(jax.random.uniform(k, s, jnp.float32, -bound, bound))
    return tuple(params)


# ----------------------------------------------------------------------------
# Pure-JAX reference (mirrors the PyTorch forward line by line)
# ----------------------------------------------------------------------------
def ref_forward(params, hidden, enc, h0, ax):
    W1, W2, W3, W4, W5, W6, W7, W8, W9, W10, W11 = params
    hid = hidden[0]
    N, M = enc.shape[0], h0.shape[0]

    exi = []
    for j in range(N):
        wx = enc[j] @ W1.T
        wxy = hid @ W2.T
        wxr = ax[:, j] @ W3.T
        exi.append(jnp.tanh(jnp.concatenate([wx, wxy, wxr], axis=1)) @ W4.T)
    exi = jnp.stack(exi, 1)                      # (B, N, 1)
    axi = jax.nn.softmax(exi, axis=1)
    cxi = jnp.einsum('bn,nbh->bh', axi[:, :, 0], enc)
    ax_new = ax + axi

    eti = []
    for j in range(M):
        wt = h0[j] @ W5.T
        wtx = cxi @ W6.T
        wty = hid @ W7.T
        eti.append(jnp.tanh(jnp.concatenate([wt, wtx, wty], axis=1)) @ W8.T)
    eti = jnp.stack(eti, 1)                      # (B, M, 1)
    ati = jax.nn.softmax(eti, axis=1)
    cti = jnp.einsum('bm,mbh->bh', ati[:, :, 0], h0)

    gxi = jnp.tanh(cxi @ W9.T)
    gti = jnp.tanh(cti @ W10.T)
    zi = jax.nn.sigmoid(jnp.concatenate([cxi, cti], axis=1) @ W11.T)
    ci = zi * gxi + (1.0 - zi) * gti
    return ci, ax_new


if __name__ == "__main__":
    B, H = 2, 32          # batch, hidden_size (attn_size = 16)
    N_ENC, N_H0 = 8, 6    # number of encoder hiddens / h0 states
    T = 4                 # fused decoder timesteps

    key = jax.random.PRNGKey(0)
    kp, kh, ke, k0, ka = jax.random.split(key, 5)
    params = init_params(kp, H)

    hidden_seq = jax.random.normal(kh, (T, B, H), jnp.float32)
    encoder_hiddens = jax.random.normal(ke, (N_ENC, B, H), jnp.float32)
    h0_s = jax.random.normal(k0, (N_H0, B, H), jnp.float32)
    ax0 = jax.random.normal(ka, (B, N_ENC, 1), jnp.float32) * 0.1

    TOL = dict(atol=5e-3, rtol=5e-3)   # approx reciprocal in softmax

    # ---- single step: exact module-forward semantics -----------------------
    ci, ax_out = x_attn_forward(params, hidden_seq[:1], encoder_hiddens,
                                h0_s, ax0)
    jax.block_until_ready((ci, ax_out))
    ci_ref, ax_ref = ref_forward(params, hidden_seq[:1], encoder_hiddens,
                                 h0_s, ax0)
    np.testing.assert_allclose(np.asarray(ci), np.asarray(ci_ref), **TOL)
    np.testing.assert_allclose(np.asarray(ax_out), np.asarray(ax_ref), **TOL)

    # ---- fused multi-timestep path: pack weights / transpose states ONCE ---
    wpack, wrows, meta = pack_x_attn_params(params)
    enc_bnh, h0_bmh = prepare_states(encoder_hiddens, h0_s)
    ci_seq, ax_seq = x_attn_forward_fused(
        wpack, wrows, meta, hidden_seq, enc_bnh, h0_bmh, ax0[:, :, 0])
    jax.block_until_ready((ci_seq, ax_seq))

    ax_carry = ax0
    for t in range(T):
        ci_r, ax_carry = ref_forward(params, hidden_seq[t:t + 1],
                                     encoder_hiddens, h0_s, ax_carry)
        np.testing.assert_allclose(np.asarray(ci_seq[t]), np.asarray(ci_r),
                                   **TOL)
        np.testing.assert_allclose(np.asarray(ax_seq[t]),
                                   np.asarray(ax_carry[:, :, 0]), **TOL)

    print("KERNEL_OK")
</pallas_src>

<mosaic_0001>
module attributes {stable_mosaic.version = 11 : i64} {
  func.func @_x_attn_kernel(%arg0: i32, %arg1: i32, %arg2: memref<1x2x32xf32, #tpu.memory_space<vmem>>, %arg3: memref<2x8xf32, #tpu.memory_space<vmem>>, %arg4: memref<2x8x32xf32, #tpu.memory_space<vmem>>, %arg5: memref<2x6x32xf32, #tpu.memory_space<vmem>>, %arg6: memref<32x512xf32, #tpu.memory_space<vmem>>, %arg7: memref<9x32xf32, #tpu.memory_space<vmem>>, %arg8: memref<1x2x128xf32, #tpu.memory_space<vmem>>, %arg9: memref<2x8xf32, #tpu.memory_space<vmem>>, %arg10: memref<2x8xf32, #tpu.memory_space<vmem>>, %arg11: memref<2x6xf32, #tpu.memory_space<vmem>>) attributes {dimension_semantics = [#tpu.dimension_semantics<parallel>, #tpu.dimension_semantics<arbitrary>], iteration_bounds = array<i64: 1, 1>, scalar_prefetch = 0 : i64, scratch_operands = 3 : i64, tpu.core_type = #tpu.core_type<tc>, window_params = [{transform_indices = @transform_0, window_bounds = array<i64: 1, 2, 32>}, {transform_indices = @transform_1, window_bounds = array<i64: 2, 8>}, {transform_indices = @transform_2, window_bounds = array<i64: 2, 8, 32>}, {transform_indices = @transform_3, window_bounds = array<i64: 2, 6, 32>}, {pipeline_mode = #tpu.pipeline_mode<synchronous>, transform_indices = @transform_4, window_bounds = array<i64: 32, 512>}, {pipeline_mode = #tpu.pipeline_mode<synchronous>, transform_indices = @transform_5, window_bounds = array<i64: 9, 32>}, {transform_indices = @transform_6, window_bounds = array<i64: 1, 2, 128>}]} {
    %c0 = arith.constant 0 : index
    %c0_0 = arith.constant 0 : index
    %0 = vector.load %arg7[%c0, %c0_0] : memref<9x32xf32, #tpu.memory_space<vmem>>, vector<1x16xf32>
    %c1 = arith.constant 1 : index
    %c0_1 = arith.constant 0 : index
    %1 = vector.load %arg7[%c1, %c0_1] : memref<9x32xf32, #tpu.memory_space<vmem>>, vector<1x16xf32>
    %c2 = arith.constant 2 : index
    %c0_2 = arith.constant 0 : index
    %2 = vector.load %arg7[%c2, %c0_2] : memref<9x32xf32, #tpu.memory_space<vmem>>, vector<1x16xf32>
    %c3 = arith.constant 3 : index
    %c0_3 = arith.constant 0 : index
    %3 = vector.load %arg7[%c3, %c0_3] : memref<9x32xf32, #tpu.memory_space<vmem>>, vector<1x16xf32>
    %c4 = arith.constant 4 : index
    %c0_4 = arith.constant 0 : index
    %4 = vector.load %arg7[%c4, %c0_4] : memref<9x32xf32, #tpu.memory_space<vmem>>, vector<1x16xf32>
    %c5 = arith.constant 5 : index
    %c0_5 = arith.constant 0 : index
    %5 = vector.load %arg7[%c5, %c0_5] : memref<9x32xf32, #tpu.memory_space<vmem>>, vector<1x16xf32>
    %c6 = arith.constant 6 : index
    %c0_6 = arith.constant 0 : index
    %6 = vector.load %arg7[%c6, %c0_6] : memref<9x32xf32, #tpu.memory_space<vmem>>, vector<1x16xf32>
    %c7 = arith.constant 7 : index
    %c0_7 = arith.constant 0 : index
    %7 = vector.load %arg7[%c7, %c0_7] : memref<9x32xf32, #tpu.memory_space<vmem>>, vector<1x32xf32>
    %c8 = arith.constant 8 : index
    %c0_8 = arith.constant 0 : index
    %8 = vector.load %arg7[%c8, %c0_8] : memref<9x32xf32, #tpu.memory_space<vmem>>, vector<1x32xf32>
    %c0_9 = arith.constant 0 : index
    %c0_10 = arith.constant 0 : index
    %c0_11 = arith.constant 0 : index
    %9 = vector.load %arg4[%c0_9, %c0_10, %c0_11] : memref<2x8x32xf32, #tpu.memory_space<vmem>>, vector<2x8x32xf32>
    %c0_12 = arith.constant 0 : index
    %c0_13 = arith.constant 0 : index
    %c0_14 = arith.constant 0 : index
    %10 = vector.load %arg5[%c0_12, %c0_13, %c0_14] : memref<2x6x32xf32, #tpu.memory_space<vmem>>, vector<2x6x32xf32>
    %c0_i32 = arith.constant 0 : i32
    %11 = arith.cmpi eq, %arg1, %c0_i32 : i32
    %12 = arith.extui %11 : i1 to i32
    %c0_i32_15 = arith.constant 0 : i32
    %13 = arith.cmpi ne, %12, %c0_i32_15 : i32
    scf.if %13 {
      %c0_51 = arith.constant 0 : index
      %c384 = arith.constant 384 : index
      %117 = vector.load %arg6[%c0_51, %c384] : memref<32x512xf32, #tpu.memory_space<vmem>>, vector<32x32xf32>
      %118 = vector.shape_cast %9 : vector<2x8x32xf32> to vector<16x32xf32>
      %119 = vector.shape_cast %10 : vector<2x6x32xf32> to vector<12x32xf32>
      %120 = tpu.concatenate %118, %119 in 0 : vector<16x32xf32>, vector<12x32xf32> -> vector<28x32xf32>
      %cst_52 = arith.constant dense<0.000000e+00> : vector<28x32xf32>
      %121 = tpu.matmul %120, %117, %cst_52 {dimension_numbers = #tpu.dot_dimension_numbers<[1], [0], [0], [1], [0, 0, 1, 1], [], []>} : vector<28x32xf32>, vector<32x32xf32>, vector<28x32xf32> -> vector<28x32xf32>
      %122 = math.tanh %121 : vector<28x32xf32>
      %123 = vector.extract_strided_slice %122 {offsets = [0, 0], sizes = [16, 16], strides = [1, 1]} : vector<28x32xf32> to vector<16x16xf32>
      %124 = vector.shape_cast %123 : vector<16x16xf32> to vector<2x8x16xf32>
      %125 = vector.extract_strided_slice %122 {offsets = [16, 16], sizes = [12, 16], strides = [1, 1]} : vector<28x32xf32> to vector<12x16xf32>
      %126 = vector.shape_cast %125 : vector<12x16xf32> to vector<2x6x16xf32>
      %127 = vector.shape_cast %1 : vector<1x16xf32> to vector<1x1x16xf32>
      %128 = vector.broadcast %127 : vector<1x1x16xf32> to vector<2x8x16xf32>
      %129 = arith.mulf %124, %128 : vector<2x8x16xf32>
      %cst_53 = arith.constant dense<0.000000e+00> : vector<2x8xf32>
      %130 = vector.multi_reduction <add>, %129, %cst_53 [2] : vector<2x8x16xf32> to vector<2x8xf32>
      %c0_54 = arith.constant 0 : index
      %c0_55 = arith.constant 0 : index
      %131 = vector.load %arg10[%c0_54, %c0_55] : memref<2x8xf32, #tpu.memory_space<vmem>>, vector<2x8xf32>
      tpu.vector_store %arg10[%c0_54, %c0_55], %130 {strides = array<i32>} : memref<2x8xf32, #tpu.memory_space<vmem>>, vector<2x8xf32>,
      %132 = vector.shape_cast %4 : vector<1x16xf32> to vector<1x1x16xf32>
      %133 = vector.broadcast %132 : vector<1x1x16xf32> to vector<2x6x16xf32>
      %134 = arith.mulf %126, %133 : vector<2x6x16xf32>
      %cst_56 = arith.constant dense<0.000000e+00> : vector<2x6xf32>
      %135 = vector.multi_reduction <add>, %134, %cst_56 [2] : vector<2x6x16xf32> to vector<2x6xf32>
      %c0_57 = arith.constant 0 : index
      %c0_58 = arith.constant 0 : index
      %136 = vector.load %arg11[%c0_57, %c0_58] : memref<2x6xf32, #tpu.memory_space<vmem>>, vector<2x6xf32>
      tpu.vector_store %arg11[%c0_57, %c0_58], %135 {strides = array<i32>} : memref<2x6xf32, #tpu.memory_space<vmem>>, vector<2x6xf32>,
      %c0_59 = arith.constant 0 : index
      %c0_60 = arith.constant 0 : index
      %137 = vector.load %arg3[%c0_59, %c0_60] : memref<2x8xf32, #tpu.memory_space<vmem>>, vector<2x8xf32>
      %c0_61 = arith.constant 0 : index
      %c0_62 = arith.constant 0 : index
      %138 = vector.load %arg9[%c0_61, %c0_62] : memref<2x8xf32, #tpu.memory_space<vmem>>, vector<2x8xf32>
      tpu.vector_store %arg9[%c0_61, %c0_62], %137 {strides = array<i32>} : memref<2x8xf32, #tpu.memory_space<vmem>>, vector<2x8xf32>,
    } else {
    }
    %c0_16 = arith.constant 0 : index
    %c0_17 = arith.constant 0 : index
    %c0_18 = arith.constant 0 : index
    %14 = vector.load %arg2[%c0_16, %c0_17, %c0_18] : memref<1x2x32xf32, #tpu.memory_space<vmem>>, vector<1x2x32xf32>
    %15 = vector.shape_cast %14 : vector<1x2x32xf32> to vector<2x32xf32>
    %c0_19 = arith.constant 0 : index
    %c0_20 = arith.constant 0 : index
    %16 = vector.load %arg9[%c0_19, %c0_20] : memref<2x8xf32, #tpu.memory_space<vmem>>, vector<2x8xf32>
    %c0_21 = arith.constant 0 : index
    %c0_22 = arith.constant 0 : index
    %17 = vector.load %arg6[%c0_21, %c0_22] : memref<32x512xf32, #tpu.memory_space<vmem>>, vector<32x32xf32>
    %cst = arith.constant dense<0.000000e+00> : vector<2x32xf32>
    %18 = tpu.matmul %15, %17, %cst {dimension_numbers = #tpu.dot_dimension_numbers<[1], [0], [0], [1], [0, 0, 1, 1], [], []>} : vector<2x32xf32>, vector<32x32xf32>, vector<2x32xf32> -> vector<2x32xf32>
    %19 = math.tanh %18 : vector<2x32xf32>
    %20 = vector.extract_strided_slice %19 {offsets = [0, 0], sizes = [2, 16], strides = [1, 1]} : vector<2x32xf32> to vector<2x16xf32>
    %21 = vector.broadcast %2 : vector<1x16xf32> to vector<2x16xf32>
    %22 = arith.mulf %20, %21 : vector<2x16xf32>
    %cst_23 = arith.constant dense<0.000000e+00> : vector<2xf32>
    %23 = vector.multi_reduction <add>, %22, %cst_23 [1] : vector<2x16xf32> to vector<2xf32>
    %24 = vector.shape_cast %23 : vector<2xf32> to vector<2x1xf32>
    %25 = vector.extract_strided_slice %19 {offsets = [0, 16], sizes = [2, 16], strides = [1, 1]} : vector<2x32xf32> to vector<2x16xf32>
    %26 = vector.broadcast %6 : vector<1x16xf32> to vector<2x16xf32>
    %27 = arith.mulf %25, %26 : vector<2x16xf32>
    %cst_24 = arith.constant dense<0.000000e+00> : vector<2xf32>
    %28 = vector.multi_reduction <add>, %27, %cst_24 [1] : vector<2x16xf32> to vector<2xf32>
    %29 = vector.shape_cast %28 : vector<2xf32> to vector<2x1xf32>
    %30 = vector.shape_cast %16 : vector<2x8xf32> to vector<2x8x1xf32>
    %31 = vector.shape_cast %0 : vector<1x16xf32> to vector<1x1x16xf32>
    %32 = vector.broadcast %30 : vector<2x8x1xf32> to vector<2x8x16xf32>
    %33 = vector.broadcast %31 : vector<1x1x16xf32> to vector<2x8x16xf32>
    %34 = arith.mulf %32, %33 : vector<2x8x16xf32>
    %35 = math.tanh %34 : vector<2x8x16xf32>
    %c0_25 = arith.constant 0 : index
    %c0_26 = arith.constant 0 : index
    %36 = vector.load %arg10[%c0_25, %c0_26] : memref<2x8xf32, #tpu.memory_space<vmem>>, vector<2x8xf32>
    %37 = vector.shape_cast %3 : vector<1x16xf32> to vector<1x1x16xf32>
    %38 = vector.broadcast %37 : vector<1x1x16xf32> to vector<2x8x16xf32>
    %39 = arith.mulf %35, %38 : vector<2x8x16xf32>
    %cst_27 = arith.constant dense<0.000000e+00> : vector<2x8xf32>
    %40 = vector.multi_reduction <add>, %39, %cst_27 [2] : vector<2x8x16xf32> to vector<2x8xf32>
    %41 = arith.addf %36, %40 : vector<2x8xf32>
    %42 = vector.broadcast %24 : vector<2x1xf32> to vector<2x8xf32>
    %43 = arith.addf %41, %42 : vector<2x8xf32>
    %cst_28 = arith.constant dense<0xFF800000> : vector<2xf32>
    %44 = vector.multi_reduction <maximumf>, %43, %cst_28 [1] : vector<2x8xf32> to vector<2xf32>
    %45 = vector.shape_cast %44 : vector<2xf32> to vector<2x1xf32>
    %46 = vector.broadcast %45 : vector<2x1xf32> to vector<2x8xf32>
    %47 = arith.subf %43, %46 : vector<2x8xf32>
    %48 = math.exp %47 : vector<2x8xf32>
    %cst_29 = arith.constant dense<0.000000e+00> : vector<2xf32>
    %49 = vector.multi_reduction <add>, %48, %cst_29 [1] : vector<2x8xf32> to vector<2xf32>
    %50 = vector.shape_cast %49 : vector<2xf32> to vector<2x1xf32>
    %51 = tpu.reciprocal %50 {approx = true} : vector<2x1xf32> -> vector<2x1xf32>
    %52 = vector.broadcast %51 : vector<2x1xf32> to vector<2x8xf32>
    %53 = arith.mulf %48, %52 : vector<2x8xf32>
    %54 = arith.addf %16, %53 : vector<2x8xf32>
    %c0_30 = arith.constant 0 : index
    %c0_31 = arith.constant 0 : index
    %55 = vector.load %arg9[%c0_30, %c0_31] : memref<2x8xf32, #tpu.memory_space<vmem>>, vector<2x8xf32>
    tpu.vector_store %arg9[%c0_30, %c0_31], %54 {strides = array<i32>} : memref<2x8xf32, #tpu.memory_space<vmem>>, vector<2x8xf32>,
    %56 = vector.shape_cast %53 : vector<2x8xf32> to vector<2x8x1xf32>
    %57 = vector.broadcast %56 : vector<2x8x1xf32> to vector<2x8x32xf32>
    %58 = arith.mulf %57, %9 : vector<2x8x32xf32>
    %cst_32 = arith.constant dense<0.000000e+00> : vector<2x32xf32>
    %59 = vector.multi_reduction <add>, %58, %cst_32 [1] : vector<2x8x32xf32> to vector<2x32xf32>
    %c0_33 = arith.constant 0 : index
    %c128 = arith.constant 128 : index
    %60 = vector.load %arg6[%c0_33, %c128] : memref<32x512xf32, #tpu.memory_space<vmem>>, vector<32x48xf32>
    %cst_34 = arith.constant dense<0.000000e+00> : vector<2x48xf32>
    %61 = tpu.matmul %59, %60, %cst_34 {dimension_numbers = #tpu.dot_dimension_numbers<[1], [0], [0], [1], [0, 0, 1, 1], [], []>} : vector<2x32xf32>, vector<32x48xf32>, vector<2x48xf32> -> vector<2x48xf32>
    %62 = math.tanh %61 : vector<2x48xf32>
    %63 = vector.extract_strided_slice %62 {offsets = [0, 0], sizes = [2, 16], strides = [1, 1]} : vector<2x48xf32> to vector<2x16xf32>
    %64 = vector.broadcast %5 : vector<1x16xf32> to vector<2x16xf32>
    %65 = arith.mulf %63, %64 : vector<2x16xf32>
    %cst_35 = arith.constant dense<0.000000e+00> : vector<2xf32>
    %66 = vector.multi_reduction <add>, %65, %cst_35 [1] : vector<2x16xf32> to vector<2xf32>
    %67 = vector.shape_cast %66 : vector<2xf32> to vector<2x1xf32>
    %68 = vector.extract_strided_slice %62 {offsets = [0, 16], sizes = [2, 32], strides = [1, 1]} : vector<2x48xf32> to vector<2x32xf32>
    %c0_36 = arith.constant 0 : index
    %c0_37 = arith.constant 0 : index
    %69 = vector.load %arg11[%c0_36, %c0_37] : memref<2x6xf32, #tpu.memory_space<vmem>>, vector<2x6xf32>
    %70 = vector.broadcast %67 : vector<2x1xf32> to vector<2x6xf32>
    %71 = arith.addf %69, %70 : vector<2x6xf32>
    %72 = vector.broadcast %29 : vector<2x1xf32> to vector<2x6xf32>
    %73 = arith.addf %71, %72 : vector<2x6xf32>
    %cst_38 = arith.constant dense<0xFF800000> : vector<2xf32>
    %74 = vector.multi_reduction <maximumf>, %73, %cst_38 [1] : vector<2x6xf32> to vector<2xf32>
    %75 = vector.shape_cast %74 : vector<2xf32> to vector<2x1xf32>
    %76 = vector.broadcast %75 : vector<2x1xf32> to vector<2x6xf32>
    %77 = arith.subf %73, %76 : vector<2x6xf32>
    %78 = math.exp %77 : vector<2x6xf32>
    %cst_39 = arith.constant dense<0.000000e+00> : vector<2xf32>
    %79 = vector.multi_reduction <add>, %78, %cst_39 [1] : vector<2x6xf32> to vector<2xf32>
    %80 = vector.shape_cast %79 : vector<2xf32> to vector<2x1xf32>
    %81 = tpu.reciprocal %80 {approx = true} : vector<2x1xf32> -> vector<2x1xf32>
    %82 = vector.broadcast %81 : vector<2x1xf32> to vector<2x6xf32>
    %83 = arith.mulf %78, %82 : vector<2x6xf32>
    %84 = vector.shape_cast %83 : vector<2x6xf32> to vector<2x6x1xf32>
    %85 = vector.broadcast %84 : vector<2x6x1xf32> to vector<2x6x32xf32>
    %86 = arith.mulf %85, %10 : vector<2x6x32xf32>
    %cst_40 = arith.constant dense<0.000000e+00> : vector<2x32xf32>
    %87 = vector.multi_reduction <add>, %86, %cst_40 [1] : vector<2x6x32xf32> to vector<2x32xf32>
    %c0_41 = arith.constant 0 : index
    %c256 = arith.constant 256 : index
    %88 = vector.load %arg6[%c0_41, %c256] : memref<32x512xf32, #tpu.memory_space<vmem>>, vector<32x32xf32>
    %cst_42 = arith.constant dense<0.000000e+00> : vector<2x32xf32>
    %89 = tpu.matmul %87, %88, %cst_42 {dimension_numbers = #tpu.dot_dimension_numbers<[1], [0], [0], [1], [0, 0, 1, 1], [], []>} : vector<2x32xf32>, vector<32x32xf32>, vector<2x32xf32> -> vector<2x32xf32>
    %90 = math.tanh %89 : vector<2x32xf32>
    %91 = vector.broadcast %7 : vector<1x32xf32> to vector<2x32xf32>
    %92 = arith.mulf %59, %91 : vector<2x32xf32>
    %cst_43 = arith.constant dense<0.000000e+00> : vector<2xf32>
    %93 = vector.multi_reduction <add>, %92, %cst_43 [1] : vector<2x32xf32> to vector<2xf32>
    %94 = vector.shape_cast %93 : vector<2xf32> to vector<2x1xf32>
    %95 = vector.broadcast %8 : vector<1x32xf32> to vector<2x32xf32>
    %96 = arith.mulf %87, %95 : vector<2x32xf32>
    %cst_44 = arith.constant dense<0.000000e+00> : vector<2xf32>
    %97 = vector.multi_reduction <add>, %96, %cst_44 [1] : vector<2x32xf32> to vector<2xf32>
    %98 = vector.shape_cast %97 : vector<2xf32> to vector<2x1xf32>
    %99 = arith.addf %94, %98 : vector<2x1xf32>
    %100 = arith.negf %99 : vector<2x1xf32>
    %101 = math.exp %100 : vector<2x1xf32>
    %cst_45 = arith.constant 1.000000e+00 : f32
    %102 = vector.broadcast %cst_45 : f32 to vector<2x1xf32>
    %103 = arith.addf %102, %101 : vector<2x1xf32>
    %104 = arith.divf %102, %103 : vector<2x1xf32>
    %105 = vector.broadcast %104 : vector<2x1xf32> to vector<2x32xf32>
    %106 = arith.mulf %105, %68 : vector<2x32xf32>
    %cst_46 = arith.constant 1.000000e+00 : f32
    %107 = vector.broadcast %cst_46 : f32 to vector<2x1xf32>
    %108 = arith.subf %107, %104 : vector<2x1xf32>
    %109 = vector.broadcast %108 : vector<2x1xf32> to vector<2x32xf32>
    %110 = arith.mulf %109, %90 : vector<2x32xf32>
    %111 = arith.addf %106, %110 : vector<2x32xf32>
    %cst_47 = arith.constant 0.000000e+00 : f32
    %112 = vector.broadcast %cst_47 : f32 to vector<2x88xf32>
    %113 = tpu.concatenate %111, %54, %112 in 1 : vector<2x32xf32>, vector<2x8xf32>, vector<2x88xf32> -> vector<2x128xf32>
    %c0_48 = arith.constant 0 : index
    %c0_49 = arith.constant 0 : index
    %c0_50 = arith.constant 0 : index
    %114 = vector.load %arg8[%c0_48, %c0_49, %c0_50] : memref<1x2x128xf32, #tpu.memory_space<vmem>>, vector<1x2x128xf32>
    %115 = vector.shape_cast %114 : vector<1x2x128xf32> to vector<2x128xf32>
    %116 = vector.shape_cast %113 : vector<2x128xf32> to vector<1x2x128xf32>
    tpu.vector_store %arg8[%c0_48, %c0_49, %c0_50], %116 {strides = array<i32>} : memref<1x2x128xf32, #tpu.memory_space<vmem>>, vector<1x2x128xf32>,
    return
  }
  func.func @transform_0(%arg0: i32, %arg1: i32) -> (i32, i32, i32) {
    %c0_i32 = arith.constant 0 : i32
    %c0_i32_0 = arith.constant 0 : i32
    return %arg1, %arg0, %c0_i32 : i32, i32, i32
  }
  func.func @transform_1(%arg0: i32, %arg1: i32) -> (i32, i32) {
    %c0_i32 = arith.constant 0 : i32
    %c0_i32_0 = arith.constant 0 : i32
    return %arg0, %c0_i32 : i32, i32
  }
  func.func @transform_2(%arg0: i32, %arg1: i32) -> (i32, i32, i32) {
    %c0_i32 = arith.constant 0 : i32
    %c0_i32_0 = arith.constant 0 : i32
    %c0_i32_1 = arith.constant 0 : i32
    return %arg0, %c0_i32, %c0_i32_0 : i32, i32, i32
  }
  func.func @transform_3(%arg0: i32, %arg1: i32) -> (i32, i32, i32) {
    %c0_i32 = arith.constant 0 : i32
    %c0_i32_0 = arith.constant 0 : i32
    %c0_i32_1 = arith.constant 0 : i32
    return %arg0, %c0_i32, %c0_i32_0 : i32, i32, i32
  }
  func.func @transform_4(%arg0: i32, %arg1: i32) -> (i32, i32) {
    %c0_i32 = arith.constant 0 : i32
    %c0_i32_0 = arith.constant 0 : i32
    %c0_i32_1 = arith.constant 0 : i32
    return %c0_i32, %c0_i32_0 : i32, i32
  }
  func.func @transform_5(%arg0: i32, %arg1: i32) -> (i32, i32) {
    %c0_i32 = arith.constant 0 : i32
    %c0_i32_0 = arith.constant 0 : i32
    %c0_i32_1 = arith.constant 0 : i32
    return %c0_i32, %c0_i32_0 : i32, i32
  }
  func.func @transform_6(%arg0: i32, %arg1: i32) -> (i32, i32, i32) {
    %c0_i32 = arith.constant 0 : i32
    %c0_i32_0 = arith.constant 0 : i32
    return %arg1, %arg0, %c0_i32 : i32, i32, i32
  }
}

</mosaic_0001>

<llo_original>
// kernel: tpu_custom_call.1
$region0: #{tpu_custom_call.1}
  #allocation0 [shape = 'u32[]', space=smem, size = 0x4, offset = 0x4, fixed_abs, tag = 'smem constant byte address 0x4 - core index']
  #allocation1 [shape = 'u32[144,128]{1,0:T(1,128)}', space=vmem, size = 0x12000, scoped, tag = 'internal scratch']
  #allocation2 [shape = 'f32[2,8]{1,0:T(2,128)}', space=vmem, size = 0x400, scoped, tag = 'scratch operand']
  #allocation3 [shape = 'f32[2,8]{1,0:T(2,128)}', space=vmem, size = 0x400, scoped, tag = 'scratch operand']
  #allocation4 [shape = 'f32[2,6]{1,0:T(2,128)}', space=vmem, size = 0x400, scoped, tag = 'scratch operand']
  %s0 = inlined_call_operand.vmem [shape: f32[1,2,32], index: 0, kind: input, shape index: {}]
  %s1 = inlined_call_operand.hbm [shape: f32[2,8], index: 1, kind: input, shape index: {}]
  %s2 = inlined_call_operand.vmem [shape: f32[2,8,32], index: 2, kind: input, shape index: {}]
  %s3 = inlined_call_operand.vmem [shape: f32[2,6,32], index: 3, kind: input, shape index: {}]
  %s4 = inlined_call_operand.hbm [shape: f32[32,512], index: 4, kind: input, shape index: {}]
  %s5 = inlined_call_operand.vmem [shape: f32[9,32], index: 5, kind: input, shape index: {}]
  %s6 = inlined_call_operand.hbm [shape: f32[1,2,128], index: 6, kind: output, shape index: {}]
  %s7 = sld [smem:[#allocation0]]
  $region46: #{tpu_custom_call.1} parent=0
    _
  %s9 = ssub.s32 1, %s7
  %s10 = scalar_select 0, %s9, %s7
  $region1: #{tpu_custom_call.1} parent=0
    #allocation5 [shape = 'u8[1024]{0}', space=vmem, size = 0x400, scoped, tag = 'input window, operand 1, single buffered']
    #allocation6 [shape = 's32[1]{0}', space=sflag, size = 0x4, scoped, tag = 'scoped memory for tpu_custom_call.1']
    #allocation7 [shape = 's32[1]{0}', space=sflag, size = 0x4, scoped, tag = 'scoped memory for tpu_custom_call.1']
    #allocation8 [shape = 'u8[65536]{0}', space=vmem, size = 0x10000, scoped, tag = 'input window, operand 4, single buffered']
    #allocation9 [shape = 's32[1]{0}', space=sflag, size = 0x4, scoped, tag = 'scoped memory for tpu_custom_call.1']
    #allocation10 [shape = 'u8[1024]{0}', space=vmem, size = 0x400, scoped, tag = 'output window, operand 0, single buffered']
    %11 = vsyncpa [#allocation6], 0
    %12 = vsyncpa [#allocation9], 0
    %13 = vsyncpa [#allocation7], 0
    // Predicated region
    $region2: #{tpu_custom_call.1} parent=1 // pred_check
      _
    $region3: #{tpu_custom_call.1} parent=1 // pred_check_branch
      %15 = sbr.rel (0) target = $region5
    $region4: #{tpu_custom_call.1} parent=1 // pred_region
      _
    $region5: #{tpu_custom_call.1} parent=1 // pred_fallthru
      _
    // Predicated region
    $region6: #{tpu_custom_call.1} parent=1 // pred_check
      _
    $region7: #{tpu_custom_call.1} parent=1 // pred_check_branch
      %17 = sbr.rel (0) target = $region9
    $region8: #{tpu_custom_call.1} parent=1 // pred_region
      %s19 = ssub.s32 32, 32
      %20 = vsyncadd [#allocation6], %s19
      %s22 = sshll.u32 [#allocation5], 4
      %s23 = int_to_ptr.vmem [resolvable:$true] %s22
      %25 = dma.hbm_to_vmem [thread:$0]  %s1, 32, %s23, [#allocation6]
    $region9: #{tpu_custom_call.1} parent=1 // pred_fallthru
      _
    // Predicated region
    $region10: #{tpu_custom_call.1} parent=1 // pred_check
      _
    $region11: #{tpu_custom_call.1} parent=1 // pred_check_branch
      %27 = sbr.rel (0) target = $region13
    $region12: #{tpu_custom_call.1} parent=1 // pred_region
      _
    $region13: #{tpu_custom_call.1} parent=1 // pred_fallthru
      _
    // Predicated region
    $region14: #{tpu_custom_call.1} parent=1 // pred_check
      _
    $region15: #{tpu_custom_call.1} parent=1 // pred_check_branch
      %29 = sbr.rel (0) target = $region17
    $region16: #{tpu_custom_call.1} parent=1 // pred_region
      _
    $region17: #{tpu_custom_call.1} parent=1 // pred_fallthru
      _
    // Predicated region
    $region18: #{tpu_custom_call.1} parent=1 // pred_check
      _
    $region19: #{tpu_custom_call.1} parent=1 // pred_check_branch
      %31 = sbr.rel (0) target = $region21
    $region20: #{tpu_custom_call.1} parent=1 // pred_region
      %s33 = ssub.s32 2048, 2048
      %34 = vsyncadd [#allocation9], %s33
      %s35 = sshll.u32 [#allocation8], 4
      %s36 = int_to_ptr.vmem [resolvable:$true] %s35
      %41 = dma.hbm_to_vmem [thread:$0]  %s4, 2048, %s36, [#allocation9], 512, 512, 32
    $region21: #{tpu_custom_call.1} parent=1 // pred_fallthru
      _
    // Predicated region
    $region22: #{tpu_custom_call.1} parent=1 // pred_check
      _
    $region23: #{tpu_custom_call.1} parent=1 // pred_check_branch
      %43 = sbr.rel (0) target = $region25
    $region24: #{tpu_custom_call.1} parent=1 // pred_region
      _
    $region25: #{tpu_custom_call.1} parent=1 // pred_fallthru
      _
    // Predicated region
    $region26: #{tpu_custom_call.1} parent=1 // pred_check
      _
    $region27: #{tpu_custom_call.1} parent=1 // pred_check_branch
      %45 = sbr.rel (0) target = $region29
    $region28: #{tpu_custom_call.1} parent=1 // pred_region
      %46 = dma.done [#allocation6], 32
    $region29: #{tpu_custom_call.1} parent=1 // pred_fallthru
      _
    // Predicated region
    $region30: #{tpu_custom_call.1} parent=1 // pred_check
      _
    $region31: #{tpu_custom_call.1} parent=1 // pred_check_branch
      %48 = sbr.rel (0) target = $region33
    $region32: #{tpu_custom_call.1} parent=1 // pred_region
      %49 = dma.done [#allocation9], 2048
    $region33: #{tpu_custom_call.1} parent=1 // pred_fallthru
      _
    %v50 = vld [vmem:[%s5] sm:$0x1]
    %v51 = vld [vmem:[%s5 + $0x1] sm:$0x1]
    %v52 = vld [vmem:[%s5 + $0x2] sm:$0x1]
    %v53 = vld [vmem:[%s5 + $0x3] sm:$0x1]
    %v54 = vld [vmem:[%s5 + $0x4] sm:$0x1]
    %v55 = vld [vmem:[%s5 + $0x5] sm:$0x1]
    %v56 = vld [vmem:[%s5 + $0x6] sm:$0x1]
    %v57 = vld [vmem:[%s5 + $0x7] sm:$0x1]
    %v58 = vld [vmem:[%s5 + $0x8] sm:$0x1]
    %v59 = vld [vmem:[%s2] sm:$0xff]
    %v60 = vld [vmem:[%s2 + $0x8] sm:$0xff]
    %v61 = vld [vmem:[%s3] sm:$0x3f]
    %v62 = vld [vmem:[%s3 + $0x8] sm:$0x3f]
    %p63 = scmp.eq.s32.totalorder 0, 0
    // Predicated region
    $region34: #{tpu_custom_call.1} parent=1 // pred_check
      %p64 = pneg %p63
    $region35: #{tpu_custom_call.1} parent=1 // pred_check_branch
      %66 = sbr.rel (%p64) target = $region37
    $region36: #{tpu_custom_call.1} parent=1 // pred_region
      %v67 = vld [vmem:[#allocation8 + $0x18] sm:$0xff]
      %v68 = vld [vmem:[#allocation8 + $0x38] sm:$0xff]
      %v69 = vld [vmem:[#allocation8 + $0x58] sm:$0xff]
      %v70 = vld [vmem:[#allocation8 + $0x78] sm:$0xff]
      %v73 = vcombine.high %v61, %v61
      %v75 = vunpack.c.l.s4 1983009808
      %v76 = vunpack.c.0.s8 %v75
      %v77 = vlaneseq
      %v78 = vshrl.u32 %v77, 7
      %v79 = vsub.s32 %v76, %v78
      %v80 = vrot.slane %v61, %v79
      %v82 = vunpack.c.l.s4 1983009808
      %v83 = vunpack.c.0.s8 %v82
      %v84 = vlaneseq
      %v85 = vshrl.u32 %v84, 7
      %v86 = vsub.s32 %v83, %v85
      %v87 = vrot.slane %v73, %v86
      %v88 = vcombine.high %v80, %v80
      %v89 = vcombine.high %v62, %v62
      %v91 = vunpack.c.l.s4 1983009808
      %v92 = vunpack.c.0.s8 %v91
      %v93 = vlaneseq
      %v94 = vshrl.u32 %v93, 7
      %v95 = vsub.s32 %v92, %v94
      %v96 = vrot.slane %v62, %v95
      %v98 = vunpack.c.l.s4 1983009808
      %v99 = vunpack.c.0.s8 %v98
      %v100 = vlaneseq
      %v101 = vshrl.u32 %v100, 7
      %v102 = vsub.s32 %v99, %v101
      %v103 = vrot.slane %v89, %v102
      %v104 = vcombine.high %v96, %v96
      %v105 = vcombine.low %v80, %v88
      %v106 = vcombine.low %v87, %v96
      %v108 = vunpack.c.l.s4 1983009808
      %v109 = vunpack.c.0.s8 %v108
      %v110 = vlaneseq
      %v111 = vshrl.u32 %v110, 7
      %v112 = vsub.s32 %v109, %v111
      %v113 = vrot.slane %v105, %v112
      %v115 = vunpack.c.l.s4 1983009808
      %v116 = vunpack.c.0.s8 %v115
      %v117 = vlaneseq
      %v118 = vshrl.u32 %v117, 7
      %v119 = vsub.s32 %v116, %v118
      %v120 = vrot.slane %v106, %v119
      %v121 = vcombine.low %v113, %v120
      %v122 = vcombine.low %v104, %v103
      %v124 = vunpack.c.l.s4 1983009808
      %v125 = vunpack.c.0.s8 %v124
      %v126 = vlaneseq
      %v127 = vshrl.u32 %v126, 7
      %v128 = vsub.s32 %v125, %v127
      %v129 = vrot.slane %v122, %v128
      %vm130 = vcmask 261120
      %v132 = vsel %vm130, %v59, 0
      %v135 = vsel %vm130, %v60, 0
      %v137 = vsel %vm130, %v121, 0
      %v139 = vsel %vm130, %v129, 0
      %141 = vmatprep.subr.mxu0 0.0
      %142 = vmatpush1.msra.mxu0 %v67
      %143 = vmatprep.subr.mxu0 0.0
      %144 = vmatpush1.msra.mxu0 %v68
      %145 = vmatprep.subr.mxu0 0.0
      %146 = vmatpush1.msra.mxu0 %v69
      %147 = vmatprep.subr.mxu0 0.0
      %148 = vmatpush1.msra.mxu0 %v70
      %149 = vmatprep.subr.mxu0 0.0
      %150 = vmatpush1.msra.mxu0 0.0
      %151 = vmatprep.subr.mxu0 0.0
      %152 = vmatpush1.msra.mxu0 0.0
      %153 = vmatprep.subr.mxu0 0.0
      %154 = vmatpush1.msra.mxu0 0.0
      %155 = vmatprep.subr.mxu0 0.0
      %156 = vmatpush1.msra.mxu0 0.0
      %157 = vmatprep.subr.mxu0 0.0
      %158 = vmatpush1.msra.mxu0 0.0
      %159 = vmatprep.subr.mxu0 0.0
      %160 = vmatpush1.msra.mxu0 0.0
      %161 = vmatprep.subr.mxu0 0.0
      %162 = vmatpush1.msra.mxu0 0.0
      %163 = vmatprep.subr.mxu0 0.0
      %164 = vmatpush1.msra.mxu0 0.0
      %165 = vmatprep.subr.mxu0 0.0
      %166 = vmatpush1.msra.mxu0 0.0
      %167 = vmatprep.subr.mxu0 0.0
      %168 = vmatpush1.msra.mxu0 0.0
      %169 = vmatprep.subr.mxu0 0.0
      %170 = vmatpush1.msra.mxu0 0.0
      %171 = vmatprep.subr.mxu0 0.0
      %172 = vmatpush1.msra.mxu0 0.0
      %173 = vmatprep.subr.mxu0 0.0
      %174 = vmatpush1.msra.mxu0 0.0
      %175 = vmatprep.subr.mxu0 0.0
      %176 = vmatpush1.msra.mxu0 0.0
      %177 = vmatprep.subr.mxu0 0.0
      %178 = vmatpush1.msra.mxu0 0.0
      %179 = vmatprep.subr.mxu0 0.0
      %180 = vmatpush1.msra.mxu0 0.0
      %181 = vmatprep.subr.mxu0 0.0
      %182 = vmatpush1.msra.mxu0 0.0
      %183 = vmatprep.subr.mxu0 0.0
      %184 = vmatpush1.msra.mxu0 0.0
      %185 = vmatprep.subr.mxu0 0.0
      %186 = vmatpush1.msra.mxu0 0.0
      %187 = vmatprep.subr.mxu0 0.0
      %188 = vmatpush1.msra.mxu0 0.0
      %189 = vmatprep.subr.mxu0 0.0
      %190 = vmatpush1.msra.mxu0 0.0
      %191 = vmatprep.subr.mxu0 0.0
      %192 = vmatpush1.msra.mxu0 0.0
      %193 = vmatprep.subr.mxu0 0.0
      %194 = vmatpush1.msra.mxu0 0.0
      %195 = vmatprep.subr.mxu0 0.0
      %196 = vmatpush1.msra.mxu0 0.0
      %197 = vmatprep.subr.mxu0 0.0
      %198 = vmatpush1.msra.mxu0 0.0
      %199 = vmatprep.subr.mxu0 0.0
      %200 = vmatpush1.msra.mxu0 0.0
      %201 = vmatprep.subr.mxu0 0.0
      %202 = vmatpush1.msra.mxu0 0.0
      %203 = vmatprep.subr.mxu0 0.0
      %204 = vmatpush1.msra.mxu0 0.0
      %205 = vmatprep.mubr.f32.mxu0 0.0
      %206 = vmatmul.mubr.f32.gmra.mrb[0].mxu0 %v132
      %v207 = vpop.f32.mrb[0].mxu0
      %v208 = vadd.f32 0.0, %v207
      %v209 = vpop.f32.mrb[0].mxu0
      %210 = vmatprep.mubr.f32.mxu0 0.0
      %211 = vmatmul.mubr.f32.gmra.mrb[0].mxu0 %v135
      %v212 = vpop.f32.mrb[0].mxu0
      %v213 = vadd.f32 0.0, %v212
      %v214 = vpop.f32.mrb[0].mxu0
      %215 = vmatprep.mubr.f32.mxu0 0.0
      %216 = vmatmul.mubr.f32.gmra.mrb[0].mxu0 %v137
      %v217 = vpop.f32.mrb[0].mxu0
      %v218 = vadd.f32 0.0, %v217
      %v219 = vpop.f32.mrb[0].mxu0
      %220 = vmatprep.mubr.f32.mxu0 0.0
      %221 = vmatmul.mubr.f32.gmra.mrb[0].mxu0 %v139
      %v222 = vpop.f32.mrb[0].mxu0
      %v223 = vadd.f32 0.0, %v222
      %v224 = vpop.f32.mrb[0].mxu0
      %225 = vdwg.mxu0
      %v226 = vtanh.pop %v208
      %v227 = vtanh.pop %v213
      %v228 = vtanh.pop %v218
      %v229 = vtanh.pop %v223
      %v232 = vcombine.high %v228, %v228
      %v234 = vunpack.c.l.s4 1983009808
      %v235 = vunpack.c.0.s8 %v234
      %v236 = vlaneseq
      %v237 = vshrl.u32 %v236, 7
      %v238 = vsub.s32 %v235, %v237
      %v239 = vrot.slane %v228, %v238
      %v241 = vunpack.c.l.s4 1983009808
      %v242 = vunpack.c.0.s8 %v241
      %v243 = vlaneseq
      %v244 = vshrl.u32 %v243, 7
      %v245 = vsub.s32 %v242, %v244
      %v246 = vrot.slane %v232, %v245
      %v247 = vcombine.high %v239, %v239
      %v248 = vcombine.high %v246, %v246
      %v250 = vunpack.c.l.s4 1983009808
      %v251 = vunpack.c.0.s8 %v250
      %v252 = vlaneseq
      %v253 = vshrl.u32 %v252, 7
      %v254 = vsub.s32 %v251, %v253
      %v255 = vrot.slane %v229, %v254
      %v256 = vcombine.high %v255, %v255
      %v263 = vlaneseq
      %v264 = vshrl.u32 %v263, 7
      %v265 = vsub.s32 0, %v264
      %v266 = vrot.slane %v51, %v265
      %v267 = vmul.f32 %v226, %v266
      %v268 = vmul.f32 %v227, %v266
      %vm269 = vcmask 130048
      %v270 = vsel %vm269, %v267, 0.0
      %271 = vadd.xlane.f32.xlu0 %v270
      %v272 = vpop.xlane.xlu0 %271
      %v273 = vsel %vm269, %v268, 0.0
      %274 = vadd.xlane.f32.xlu0 %v273
      %v275 = vpop.xlane.xlu0 %274
      %v278 = vlaneseq
      %v279 = vand.u32 %v278, 127
      %v280 = vlaneseq
      %v281 = vshrl.u32 %v280, 7
      %v282 = vsub.s32 %v279, %v281
      %v283 = vrot.slane %v272, %v282
      %v284 = vlaneseq
      %v285 = vshrl.u32 %v284, 7
      %v286 = vsub.s32 %v279, %v285
      %v287 = vrot.slane %v275, %v286
      %vm288 = vcmask 1041409
      %v289 = vsel %vm288, %v287, %v283
      %vm291 = vcmask 58368
      %292 = vst.msk [vmem:[#allocation3] sm:$0x3] %vm291, %v289
      %v293 = vlaneseq
      %v294 = vshrl.u32 %v293, 7
      %v295 = vsub.s32 0, %v294
      %v296 = vrot.slane %v54, %v295
      %v298 = vcombine.high %v296, %v296
      %v300 = vunpack.c.l.s4 1983009808
      %v301 = vunpack.c.0.s8 %v300
      %v302 = vlaneseq
      %v303 = vshrl.u32 %v302, 7
      %v304 = vsub.s32 %v301, %v303
      %v305 = vrot.slane %v296, %v304
      %v307 = vunpack.c.l.s4 1983009808
      %v308 = vunpack.c.0.s8 %v307
      %v309 = vlaneseq
      %v310 = vshrl.u32 %v309, 7
      %v311 = vsub.s32 %v308, %v310
      %v312 = vrot.slane %v298, %v311
      %v313 = vcombine.high %v305, %v305
      %314 = vrot.lane.b32.xlu0 %v305, 16
      %v315 = vpop.permute.xlu0 %314
      %316 = vrot.lane.b32.xlu0 %v313, 16
      %v317 = vpop.permute.xlu0 %316
      %318 = vrot.lane.b32.xlu0 %v312, 16
      %v319 = vpop.permute.xlu0 %318
      %v323 = vmul.f32 %v239, %v315
      %v324 = vmul.f32 %v247, %v317
      %v325 = vmul.f32 %v246, %v319
      %v326 = vmul.f32 %v248, %v315
      %v327 = vmul.f32 %v255, %v317
      %v328 = vmul.f32 %v256, %v319
      %v335 = vcombine.low %v323, %v324
      %v337 = vunpack.c.l.s4 1983009808
      %v338 = vunpack.c.0.s8 %v337
      %v339 = vlaneseq
      %v340 = vshrl.u32 %v339, 7
      %v341 = vsub.s32 %v338, %v340
      %v342 = vrot.slane %v335, %v341
      %v344 = vunpack.c.l.s4 1983009808
      %v345 = vunpack.c.0.s8 %v344
      %v346 = vlaneseq
      %v347 = vshrl.u32 %v346, 7
      %v348 = vsub.s32 %v345, %v347
      %v349 = vrot.slane %v325, %v348
      %v350 = vcombine.low %v342, %v349
      %v351 = vcombine.low %v326, %v327
      %v353 = vunpack.c.l.s4 1983009808
      %v354 = vunpack.c.0.s8 %v353
      %v355 = vlaneseq
      %v356 = vshrl.u32 %v355, 7
      %v357 = vsub.s32 %v354, %v356
      %v358 = vrot.slane %v351, %v357
      %v360 = vunpack.c.l.s4 1983009808
      %v361 = vunpack.c.0.s8 %v360
      %v362 = vlaneseq
      %v363 = vshrl.u32 %v362, 7
      %v364 = vsub.s32 %v361, %v363
      %v365 = vrot.slane %v328, %v364
      %v366 = vcombine.low %v358, %v365
      %367 = vrot.lane.b32.xlu0 %v350, 112
      %v368 = vpop.permute.xlu0 %367
      %369 = vrot.lane.b32.xlu0 %v366, 112
      %v370 = vpop.permute.xlu0 %369
      %vm373 = vcmask 128000
      %v374 = vsel %vm373, %v368, 0.0
      %375 = vadd.xlane.f32.xlu0 %v374
      %v376 = vpop.xlane.xlu0 %375
      %v377 = vsel %vm373, %v370, 0.0
      %378 = vadd.xlane.f32.xlu0 %v377
      %v379 = vpop.xlane.xlu0 %378
      %v382 = vlaneseq
      %v383 = vshrl.u32 %v382, 7
      %v384 = vsub.s32 %v279, %v383
      %v385 = vrot.slane %v376, %v384
      %v386 = vlaneseq
      %v387 = vshrl.u32 %v386, 7
      %v388 = vsub.s32 %v279, %v387
      %v389 = vrot.slane %v379, %v388
      %v390 = vsel %vm288, %v389, %v385
      %vm392 = vcmask 41984
      %393 = vst.msk [vmem:[#allocation4] sm:$0x3] %vm392, %v390
      %v394 = vld [vmem:[#allocation5] sm:$0x3]
      %395 = vst.msk [vmem:[#allocation2] sm:$0x3] %vm291, %v394
    $region37: #{tpu_custom_call.1} parent=1 // pred_fallthru
      _
    %v396 = vld [vmem:[%s0] sm:$0x3]
    %v397 = vld [vmem:[#allocation2] sm:$0x3]
    %v398 = vld [vmem:[#allocation8] sm:$0xff]
    %v399 = vld [vmem:[#allocation8 + $0x20] sm:$0xff]
    %v400 = vld [vmem:[#allocation8 + $0x40] sm:$0xff]
    %v401 = vld [vmem:[#allocation8 + $0x60] sm:$0xff]
    %vm402 = vcmask 261120
    %v404 = vsel %vm402, %v396, 0
    %406 = vmatprep.subr.mxu0 0.0
    %407 = vmatpush1.msra.mxu0 %v398
    %408 = vmatprep.subr.mxu0 0.0
    %409 = vmatpush1.msra.mxu0 %v399
    %410 = vmatprep.subr.mxu0 0.0
    %411 = vmatpush1.msra.mxu0 %v400
    %412 = vmatprep.subr.mxu0 0.0
    %413 = vmatpush1.msra.mxu0 %v401
    %414 = vmatprep.subr.mxu0 0.0
    %415 = vmatpush1.msra.mxu0 0.0
    %416 = vmatprep.subr.mxu0 0.0
    %417 = vmatpush1.msra.mxu0 0.0
    %418 = vmatprep.subr.mxu0 0.0
    %419 = vmatpush1.msra.mxu0 0.0
    %420 = vmatprep.subr.mxu0 0.0
    %421 = vmatpush1.msra.mxu0 0.0
    %422 = vmatprep.subr.mxu0 0.0
    %423 = vmatpush1.msra.mxu0 0.0
    %424 = vmatprep.subr.mxu0 0.0
    %425 = vmatpush1.msra.mxu0 0.0
    %426 = vmatprep.subr.mxu0 0.0
    %427 = vmatpush1.msra.mxu0 0.0
    %428 = vmatprep.subr.mxu0 0.0
    %429 = vmatpush1.msra.mxu0 0.0
    %430 = vmatprep.subr.mxu0 0.0
    %431 = vmatpush1.msra.mxu0 0.0
    %432 = vmatprep.subr.mxu0 0.0
    %433 = vmatpush1.msra.mxu0 0.0
    %434 = vmatprep.subr.mxu0 0.0
    %435 = vmatpush1.msra.mxu0 0.0
    %436 = vmatprep.subr.mxu0 0.0
    %437 = vmatpush1.msra.mxu0 0.0
    %438 = vmatprep.subr.mxu0 0.0
    %439 = vmatpush1.msra.mxu0 0.0
    %440 = vmatprep.subr.mxu0 0.0
    %441 = vmatpush1.msra.mxu0 0.0
    %442 = vmatprep.subr.mxu0 0.0
    %443 = vmatpush1.msra.mxu0 0.0
    %444 = vmatprep.subr.mxu0 0.0
    %445 = vmatpush1.msra.mxu0 0.0
    %446 = vmatprep.subr.mxu0 0.0
    %447 = vmatpush1.msra.mxu0 0.0
    %448 = vmatprep.subr.mxu0 0.0
    %449 = vmatpush1.msra.mxu0 0.0
    %450 = vmatprep.subr.mxu0 0.0
    %451 = vmatpush1.msra.mxu0 0.0
    %452 = vmatprep.subr.mxu0 0.0
    %453 = vmatpush1.msra.mxu0 0.0
    %454 = vmatprep.subr.mxu0 0.0
    %455 = vmatpush1.msra.mxu0 0.0
    %456 = vmatprep.subr.mxu0 0.0
    %457 = vmatpush1.msra.mxu0 0.0
    %458 = vmatprep.subr.mxu0 0.0
    %459 = vmatpush1.msra.mxu0 0.0
    %460 = vmatprep.subr.mxu0 0.0
    %461 = vmatpush1.msra.mxu0 0.0
    %462 = vmatprep.subr.mxu0 0.0
    %463 = vmatpush1.msra.mxu0 0.0
    %464 = vmatprep.subr.mxu0 0.0
    %465 = vmatpush1.msra.mxu0 0.0
    %466 = vmatprep.subr.mxu0 0.0
    %467 = vmatpush1.msra.mxu0 0.0
    %468 = vmatprep.subr.mxu0 0.0
    %469 = vmatpush1.msra.mxu0 0.0
    %470 = vmatprep.mubr.f32.mxu0 0.0
    %471 = vmatmul.mubr.f32.gmra.mrb[0].mxu0 %v404
    %v472 = vpop.f32.mrb[0].mxu0
    %v473 = vadd.f32 0.0, %v472
    %v474 = vpop.f32.mrb[0].mxu0
    %475 = vdwg.mxu0
    %v476 = vtanh.pop %v473
    %v477 = vlaneseq
    %v478 = vshrl.u32 %v477, 7
    %v479 = vsub.s32 0, %v478
    %v480 = vrot.slane %v52, %v479
    %v481 = vmul.f32 %v476, %v480
    %vm482 = vcmask 123904
    %v483 = vsel %vm482, %v481, 0.0
    %484 = vadd.xlane.f32.xlu0 %v483
    %v485 = vpop.xlane.xlu0 %484
    %v486 = vlaneseq
    %v487 = vshrl.u32 %v486, 7
    %v488 = vsub.s32 0, %v487
    %v489 = vrot.slane %v56, %v488
    %491 = vrot.lane.b32.xlu0 %v489, 16
    %v492 = vpop.permute.xlu0 %491
    %v494 = vmul.f32 %v476, %v492
    %496 = vrot.lane.b32.xlu0 %v494, 112
    %v497 = vpop.permute.xlu0 %496
    %v499 = vsel %vm482, %v497, 0.0
    %500 = vadd.xlane.f32.xlu0 %v499
    %v501 = vpop.xlane.xlu0 %500
    %v502 = vlaneseq
    %v503 = vshrl.u32 %v502, 7
    %v504 = vsub.s32 0, %v503
    %v505 = vrot.slane %v397, %v504
    %507 = vbcast.lane.b32.xlu0 %v505, 256
    %v508 = vpop.permute.xlu0 %507
    %v509 = vlaneseq
    %v510 = vshrl.u32 %v509, 7
    %v511 = vsub.s32 1, %v510
    %v512 = vrot.slane %v397, %v511
    %514 = vbcast.lane.b32.xlu0 %v512, 256
    %v515 = vpop.permute.xlu0 %514
    %v516 = vlaneseq
    %v517 = vshrl.u32 %v516, 7
    %v518 = vsub.s32 0, %v517
    %v519 = vrot.slane %v50, %v518
    %v520 = vmul.f32 %v508, %v519
    %v521 = vmul.f32 %v515, %v519
    %v522 = vtanh.pop %v520
    %v523 = vtanh.pop %v521
    %v524 = vld [vmem:[#allocation3] sm:$0x3]
    %v525 = vlaneseq
    %v526 = vshrl.u32 %v525, 7
    %v527 = vsub.s32 0, %v526
    %v528 = vrot.slane %v53, %v527
    %v529 = vmul.f32 %v522, %v528
    %v530 = vmul.f32 %v523, %v528
    %vm531 = vcmask 130048
    %v532 = vsel %vm531, %v529, 0.0
    %533 = vadd.xlane.f32.xlu0 %v532
    %v534 = vpop.xlane.xlu0 %533
    %v535 = vsel %vm531, %v530, 0.0
    %536 = vadd.xlane.f32.xlu0 %v535
    %v537 = vpop.xlane.xlu0 %536
    %v540 = vlaneseq
    %v541 = vand.u32 %v540, 127
    %v542 = vlaneseq
    %v543 = vshrl.u32 %v542, 7
    %v544 = vsub.s32 %v541, %v543
    %v545 = vrot.slane %v534, %v544
    %v546 = vlaneseq
    %v547 = vshrl.u32 %v546, 7
    %v548 = vsub.s32 %v541, %v547
    %v549 = vrot.slane %v537, %v548
    %vm550 = vcmask 1041409
    %v551 = vsel %vm550, %v549, %v545
    %v553 = vadd.f32 %v524, %v551
    %v554 = vadd.f32 %v553, %v485
    %vm555 = vcmask 58368
    %v556 = vsel %vm555, %v554, -inf
    %557 = vmax.xlane.f32.xlu0 %v556
    %v558 = vpop.xlane.xlu0 %557
    %v559 = vsub.f32 %v554, %v558
    %v560 = vmul.f32 %v559, 1.442695
    %v561 = vpow.pop %v560
    %v562 = vsel %vm555, %v561, 0.0
    %563 = vadd.xlane.f32.xlu0 %v562
    %v564 = vpop.xlane.xlu0 %563
    %v565 = vrcp.pop %v564
    %v566 = vmul.f32 %v561, %v565
    %v567 = vadd.f32 %v397, %v566
    %568 = vst.msk [vmem:[#allocation2] sm:$0x3] %vm555, %v567
    %v569 = vlaneseq
    %v570 = vshrl.u32 %v569, 7
    %v571 = vsub.s32 0, %v570
    %v572 = vrot.slane %v566, %v571
    %574 = vbcast.lane.b32.xlu0 %v572, 256
    %v575 = vpop.permute.xlu0 %574
    %v576 = vlaneseq
    %v577 = vshrl.u32 %v576, 7
    %v578 = vsub.s32 1, %v577
    %v579 = vrot.slane %v566, %v578
    %581 = vbcast.lane.b32.xlu0 %v579, 256
    %v582 = vpop.permute.xlu0 %581
    %v583 = vmul.f32 %v575, %v59
    %v584 = vmul.f32 %v582, %v60
    %v585 = vsel %vm402, %v583, 0.0
    %v586 = vrot.slane %v585, 4
    %v587 = vadd.f32 %v585, %v586
    %v588 = vrot.slane %v587, 2
    %v589 = vadd.f32 %v587, %v588
    %v590 = vrot.slane %v589, 1
    %v591 = vadd.f32 %v589, %v590
    %v592 = vsel %vm402, %v584, 0.0
    %v593 = vrot.slane %v592, 4
    %v594 = vadd.f32 %v592, %v593
    %v595 = vrot.slane %v594, 2
    %v596 = vadd.f32 %v594, %v595
    %v597 = vrot.slane %v596, 1
    %v598 = vadd.f32 %v596, %v597
    %v599 = vld [vmem:[#allocation8 + $0x8] sm:$0xff]
    %v600 = vld [vmem:[#allocation8 + $0x28] sm:$0xff]
    %v601 = vld [vmem:[#allocation8 + $0x48] sm:$0xff]
    %v602 = vld [vmem:[#allocation8 + $0x68] sm:$0xff]
    %v605 = vsel %vm550, %v598, %v591
    %v606 = vsel %vm402, %v605, 0
    %608 = vmatprep.subr.mxu0 0.0
    %609 = vmatpush1.msra.mxu0 %v599
    %610 = vmatprep.subr.mxu0 0.0
    %611 = vmatpush1.msra.mxu0 %v600
    %612 = vmatprep.subr.mxu0 0.0
    %613 = vmatpush1.msra.mxu0 %v601
    %614 = vmatprep.subr.mxu0 0.0
    %615 = vmatpush1.msra.mxu0 %v602
    %616 = vmatprep.subr.mxu0 0.0
    %617 = vmatpush1.msra.mxu0 0.0
    %618 = vmatprep.subr.mxu0 0.0
    %619 = vmatpush1.msra.mxu0 0.0
    %620 = vmatprep.subr.mxu0 0.0
    %621 = vmatpush1.msra.mxu0 0.0
    %622 = vmatprep.subr.mxu0 0.0
    %623 = vmatpush1.msra.mxu0 0.0
    %624 = vmatprep.subr.mxu0 0.0
    %625 = vmatpush1.msra.mxu0 0.0
    %626 = vmatprep.subr.mxu0 0.0
    %627 = vmatpush1.msra.mxu0 0.0
    %628 = vmatprep.subr.mxu0 0.0
    %629 = vmatpush1.msra.mxu0 0.0
    %630 = vmatprep.subr.mxu0 0.0
    %631 = vmatpush1.msra.mxu0 0.0
    %632 = vmatprep.subr.mxu0 0.0
    %633 = vmatpush1.msra.mxu0 0.0
    %634 = vmatprep.subr.mxu0 0.0
    %635 = vmatpush1.msra.mxu0 0.0
    %636 = vmatprep.subr.mxu0 0.0
    %637 = vmatpush1.msra.mxu0 0.0
    %638 = vmatprep.subr.mxu0 0.0
    %639 = vmatpush1.msra.mxu0 0.0
    %640 = vmatprep.subr.mxu0 0.0
    %641 = vmatpush1.msra.mxu0 0.0
    %642 = vmatprep.subr.mxu0 0.0
    %643 = vmatpush1.msra.mxu0 0.0
    %644 = vmatprep.subr.mxu0 0.0
    %645 = vmatpush1.msra.mxu0 0.0
    %646 = vmatprep.subr.mxu0 0.0
    %647 = vmatpush1.msra.mxu0 0.0
    %648 = vmatprep.subr.mxu0 0.0
    %649 = vmatpush1.msra.mxu0 0.0
    %650 = vmatprep.subr.mxu0 0.0
    %651 = vmatpush1.msra.mxu0 0.0
    %652 = vmatprep.subr.mxu0 0.0
    %653 = vmatpush1.msra.mxu0 0.0
    %654 = vmatprep.subr.mxu0 0.0
    %655 = vmatpush1.msra.mxu0 0.0
    %656 = vmatprep.subr.mxu0 0.0
    %657 = vmatpush1.msra.mxu0 0.0
    %658 = vmatprep.subr.mxu0 0.0
    %659 = vmatpush1.msra.mxu0 0.0
    %660 = vmatprep.subr.mxu0 0.0
    %661 = vmatpush1.msra.mxu0 0.0
    %662 = vmatprep.subr.mxu0 0.0
    %663 = vmatpush1.msra.mxu0 0.0
    %664 = vmatprep.subr.mxu0 0.0
    %665 = vmatpush1.msra.mxu0 0.0
    %666 = vmatprep.subr.mxu0 0.0
    %667 = vmatpush1.msra.mxu0 0.0
    %668 = vmatprep.subr.mxu0 0.0
    %669 = vmatpush1.msra.mxu0 0.0
    %670 = vmatprep.subr.mxu0 0.0
    %671 = vmatpush1.msra.mxu0 0.0
    %672 = vmatprep.mubr.f32.mxu0 0.0
    %673 = vmatmul.mubr.f32.gmra.mrb[0].mxu0 %v606
    %v674 = vpop.f32.mrb[0].mxu0
    %v675 = vadd.f32 0.0, %v674
    %v676 = vpop.f32.mrb[0].mxu0
    %677 = vdwg.mxu0
    %v678 = vtanh.pop %v675
    %v679 = vlaneseq
    %v680 = vshrl.u32 %v679, 7
    %v681 = vsub.s32 0, %v680
    %v682 = vrot.slane %v55, %v681
    %v683 = vmul.f32 %v678, %v682
    %v684 = vsel %vm482, %v683, 0.0
    %685 = vadd.xlane.f32.xlu0 %v684
    %v686 = vpop.xlane.xlu0 %685
    %v687 = vld [vmem:[#allocation4] sm:$0x3]
    %v688 = vadd.f32 %v687, %v686
    %v689 = vadd.f32 %v688, %v501
    %vm690 = vcmask 41984
    %v691 = vsel %vm690, %v689, -inf
    %692 = vmax.xlane.f32.xlu0 %v691
    %v693 = vpop.xlane.xlu0 %692
    %v694 = vsub.f32 %v689, %v693
    %v695 = vmul.f32 %v694, 1.442695
    %v696 = vpow.pop %v695
    %v697 = vsel %vm690, %v696, 0.0
    %698 = vadd.xlane.f32.xlu0 %v697
    %v699 = vpop.xlane.xlu0 %698
    %v700 = vrcp.pop %v699
    %v701 = vmul.f32 %v696, %v700
    %v702 = vlaneseq
    %v703 = vshrl.u32 %v702, 7
    %v704 = vsub.s32 0, %v703
    %v705 = vrot.slane %v701, %v704
    %707 = vbcast.lane.b32.xlu0 %v705, 256
    %v708 = vpop.permute.xlu0 %707
    %v709 = vlaneseq
    %v710 = vshrl.u32 %v709, 7
    %v711 = vsub.s32 1, %v710
    %v712 = vrot.slane %v701, %v711
    %714 = vbcast.lane.b32.xlu0 %v712, 256
    %v715 = vpop.permute.xlu0 %714
    %v716 = vmul.f32 %v708, %v61
    %v717 = vmul.f32 %v715, %v62
    %vm718 = vcmask 259072
    %v719 = vsel %vm718, %v716, 0.0
    %v720 = vrot.slane %v719, 4
    %v721 = vadd.f32 %v719, %v720
    %v722 = vrot.slane %v721, 2
    %v723 = vadd.f32 %v721, %v722
    %v724 = vrot.slane %v723, 1
    %v725 = vadd.f32 %v723, %v724
    %v726 = vsel %vm718, %v717, 0.0
    %v727 = vrot.slane %v726, 4
    %v728 = vadd.f32 %v726, %v727
    %v729 = vrot.slane %v728, 2
    %v730 = vadd.f32 %v728, %v729
    %v731 = vrot.slane %v730, 1
    %v732 = vadd.f32 %v730, %v731
    %v733 = vld [vmem:[#allocation8 + $0x10] sm:$0xff]
    %v734 = vld [vmem:[#allocation8 + $0x30] sm:$0xff]
    %v735 = vld [vmem:[#allocation8 + $0x50] sm:$0xff]
    %v736 = vld [vmem:[#allocation8 + $0x70] sm:$0xff]
    %v739 = vsel %vm550, %v732, %v725
    %v740 = vsel %vm402, %v739, 0
    %742 = vmatprep.subr.mxu0 0.0
    %743 = vmatpush1.msra.mxu0 %v733
    %744 = vmatprep.subr.mxu0 0.0
    %745 = vmatpush1.msra.mxu0 %v734
    %746 = vmatprep.subr.mxu0 0.0
    %747 = vmatpush1.msra.mxu0 %v735
    %748 = vmatprep.subr.mxu0 0.0
    %749 = vmatpush1.msra.mxu0 %v736
    %750 = vmatprep.subr.mxu0 0.0
    %751 = vmatpush1.msra.mxu0 0.0
    %752 = vmatprep.subr.mxu0 0.0
    %753 = vmatpush1.msra.mxu0 0.0
    %754 = vmatprep.subr.mxu0 0.0
    %755 = vmatpush1.msra.mxu0 0.0
    %756 = vmatprep.subr.mxu0 0.0
    %757 = vmatpush1.msra.mxu0 0.0
    %758 = vmatprep.subr.mxu0 0.0
    %759 = vmatpush1.msra.mxu0 0.0
    %760 = vmatprep.subr.mxu0 0.0
    %761 = vmatpush1.msra.mxu0 0.0
    %762 = vmatprep.subr.mxu0 0.0
    %763 = vmatpush1.msra.mxu0 0.0
    %764 = vmatprep.subr.mxu0 0.0
    %765 = vmatpush1.msra.mxu0 0.0
    %766 = vmatprep.subr.mxu0 0.0
    %767 = vmatpush1.msra.mxu0 0.0
    %768 = vmatprep.subr.mxu0 0.0
    %769 = vmatpush1.msra.mxu0 0.0
    %770 = vmatprep.subr.mxu0 0.0
    %771 = vmatpush1.msra.mxu0 0.0
    %772 = vmatprep.subr.mxu0 0.0
    %773 = vmatpush1.msra.mxu0 0.0
    %774 = vmatprep.subr.mxu0 0.0
    %775 = vmatpush1.msra.mxu0 0.0
    %776 = vmatprep.subr.mxu0 0.0
    %777 = vmatpush1.msra.mxu0 0.0
    %778 = vmatprep.subr.mxu0 0.0
    %779 = vmatpush1.msra.mxu0 0.0
    %780 = vmatprep.subr.mxu0 0.0
    %781 = vmatpush1.msra.mxu0 0.0
    %782 = vmatprep.subr.mxu0 0.0
    %783 = vmatpush1.msra.mxu0 0.0
    %784 = vmatprep.subr.mxu0 0.0
    %785 = vmatpush1.msra.mxu0 0.0
    %786 = vmatprep.subr.mxu0 0.0
    %787 = vmatpush1.msra.mxu0 0.0
    %788 = vmatprep.subr.mxu0 0.0
    %789 = vmatpush1.msra.mxu0 0.0
    %790 = vmatprep.subr.mxu0 0.0
    %791 = vmatpush1.msra.mxu0 0.0
    %792 = vmatprep.subr.mxu0 0.0
    %793 = vmatpush1.msra.mxu0 0.0
    %794 = vmatprep.subr.mxu0 0.0
    %795 = vmatpush1.msra.mxu0 0.0
    %796 = vmatprep.subr.mxu0 0.0
    %797 = vmatpush1.msra.mxu0 0.0
    %798 = vmatprep.subr.mxu0 0.0
    %799 = vmatpush1.msra.mxu0 0.0
    %800 = vmatprep.subr.mxu0 0.0
    %801 = vmatpush1.msra.mxu0 0.0
    %802 = vmatprep.subr.mxu0 0.0
    %803 = vmatpush1.msra.mxu0 0.0
    %804 = vmatprep.subr.mxu0 0.0
    %805 = vmatpush1.msra.mxu0 0.0
    %806 = vmatprep.mubr.f32.mxu0 0.0
    %807 = vmatmul.mubr.f32.gmra.mrb[0].mxu0 %v740
    %v808 = vpop.f32.mrb[0].mxu0
    %v809 = vadd.f32 0.0, %v808
    %v810 = vpop.f32.mrb[0].mxu0
    %811 = vdwg.mxu0
    %v812 = vtanh.pop %v809
    %v813 = vlaneseq
    %v814 = vshrl.u32 %v813, 7
    %v815 = vsub.s32 0, %v814
    %v816 = vrot.slane %v57, %v815
    %v817 = vmul.f32 %v591, %v816
    %v818 = vmul.f32 %v598, %v816
    %v821 = vrot.slane %v818, 7
    %v822 = vsel %vm550, %v821, %v817
    %vm824 = vcmask 254976
    %v825 = vsel %vm824, %v822, 0.0
    %826 = vadd.xlane.f32.xlu0 %v825
    %v827 = vpop.xlane.xlu0 %826
    %v828 = vlaneseq
    %v829 = vshrl.u32 %v828, 7
    %v830 = vsub.s32 0, %v829
    %v831 = vrot.slane %v58, %v830
    %v832 = vmul.f32 %v725, %v831
    %v833 = vmul.f32 %v732, %v831
    %v836 = vrot.slane %v833, 7
    %v837 = vsel %vm550, %v836, %v832
    %v839 = vsel %vm824, %v837, 0.0
    %840 = vadd.xlane.f32.xlu0 %v839
    %v841 = vpop.xlane.xlu0 %840
    %v842 = vadd.f32 %v827, %v841
    %v843 = vxor.u32 %v842, 2147483648
    %v844 = vmul.f32 %v843, 1.442695
    %v845 = vpow.pop %v844
    %v846 = vadd.f32 %v845, 1.0
    %v847 = vrcp.pop %v846
    %v848 = vmul.f32 1.0, %v847
    %v849 = vmul.f32 %v848, %v678
    %v850 = vsub.f32 1.0, %v848
    %v851 = vmul.f32 %v850, %v812
    %853 = vrot.lane.b32.xlu0 %v851, 16
    %v854 = vpop.permute.xlu0 %853
    %v856 = vadd.f32 %v849, %v854
    %858 = vrot.lane.b32.xlu0 %v856, 112
    %v859 = vpop.permute.xlu0 %858
    %862 = vrot.lane.b32.xlu0 %v567, 32
    %v863 = vpop.permute.xlu0 %862
    %v865 = vsel %vm402, %v859, %v863
    %vm866 = vcmask 326656
    %v867 = vsel %vm866, %v865, 0.0
    %868 = vst [vmem:[#allocation10] sm:$0x3] %v867
    // Predicated region
    $region38: #{tpu_custom_call.1} parent=1 // pred_check
      _
    $region39: #{tpu_custom_call.1} parent=1 // pred_check_branch
      %870 = sbr.rel (0) target = $region41
    $region40: #{tpu_custom_call.1} parent=1 // pred_region
      %s872 = ssub.s32 32, 32
      %873 = vsyncadd [#allocation7], %s872
      %s875 = sshll.u32 [#allocation10], 4
      %s876 = int_to_ptr.vmem [resolvable:$true] %s875
      %878 = dma.vmem_to_hbm [thread:$0]  %s876, 32, %s6, [#allocation7]
    $region41: #{tpu_custom_call.1} parent=1 // pred_fallthru
      _
    // Predicated region
    $region42: #{tpu_custom_call.1} parent=1 // pred_check
      _
    $region43: #{tpu_custom_call.1} parent=1 // pred_check_branch
      %880 = sbr.rel (0) target = $region45
    $region44: #{tpu_custom_call.1} parent=1 // pred_region
      %881 = dma.done [#allocation7], 32
    $region45: #{tpu_custom_call.1} parent=1 // pred_fallthru
      _
    %882 = vsyncpa [#allocation6], 1
    %883 = vsyncpa [#allocation9], 1
    %884 = vsyncpa [#allocation7], 1

</llo_original>
